<compile_context>
chip_gen: v6e
topology: v6e:2x2x1
jax: 0.10.0
libtpu: 0.0.40
codegen_flags: <defaults>
</compile_context>

<pallas_src>
import functools

import jax
import jax.numpy as jnp
from jax.experimental import pallas as pl
from jax.experimental.pallas import tpu as pltpu

mat_size = {
    "mnist": (28 * 28, 200, 10),
    "cifar10": (32 * 32 * 3, 2048, 10),
    "cifar100": (32 * 32 * 3, 4096, 100),
}

_LANE = 128
_TILE_QUANTUM = 16                      # multiple of bf16 sublane packing
_VMEM_LIMIT_BYTES = 32 * 1024 * 1024    # safe on v5e/v6e (128 MiB) and v7x (64 MiB/TC)
_VMEM_BUDGET = 24 * 1024 * 1024         # ~25% slack under the scoped limit


def _round_up(x, m):
    return ((x + m - 1) // m) * m


# ----------------------------------------------------------------------------
# Pallas kernel: fused chain of Linear(+optional ReLU) layers on one batch tile.
# refs = (x, w0, b0, w1, b1, ..., out); relu_flags is static.
# ----------------------------------------------------------------------------
def _fused_mlp_kernel(*refs, relu_flags):
    x_ref = refs[0]
    out_ref = refs[-1]
    n_layers = len(relu_flags)

    # bf16 cast happens here (hidden under the activation DMA) instead of a
    # separate host-side pad/cast pass over x.
    h = x_ref[...].astype(jnp.bfloat16)              # (TB, in_feat)
    for i, apply_relu in enumerate(relu_flags):
        w = refs[1 + 2 * i][...]                     # bf16 (K_i, out_pad_i)
        b = refs[2 + 2 * i][...]                     # f32  (1, out_pad_i)
        acc = jnp.dot(h, w, preferred_element_type=jnp.float32) + b
        if apply_relu:
            acc = jnp.maximum(acc, 0.0)
        # keep MXU operands bf16 between layers; final result stays f32
        h = acc.astype(jnp.bfloat16) if i + 1 < n_layers else acc
    out_ref[...] = h.astype(out_ref.dtype)


def _pick_batch_tile(batch, in_feat, out_pad, hid_pad, weight_bytes):
    """Largest multiple-of-16 batch tile fitting VMEM, capped to >=2 grid steps."""
    # Conservative per-row accounting of coexisting VMEM buffers:
    #   x tile   : f32, double-buffered by the pipeline
    #   out tile : f32, double-buffered
    #   in-kernel: bf16 copy of x + widest f32 intermediate + its bf16 copy
    per_row = (2 * in_feat * 4) + (2 * out_pad * 4) + (in_feat * 2) + hid_pad * (4 + 2)
    tile = _TILE_QUANTUM
    for tb in (2048, 1024, 512, 256, 128, 64, 32, 16):
        if weight_bytes + tb * per_row <= _VMEM_BUDGET:
            tile = tb
            break
    # v7x has 2 TensorCores per chip: keep >= 2 grid steps whenever the batch
    # allows so dimension_semantics=("parallel",) shards across both cores.
    two_step_cap = max(_TILE_QUANTUM, _round_up((batch + 1) // 2, _TILE_QUANTUM))
    return min(tile, two_step_cap)


def fused_mlp(x, layers, relu_flags, out_features):
    """x: (B, in_feat) float; layers: list of (W bf16 (K, out_pad), b f32 (1, out_pad))."""
    assert len(layers) == len(relu_flags)
    batch, feat = x.shape
    in_feat = layers[0][0].shape[0]
    assert feat == in_feat, (feat, in_feat)
    out_pad = layers[-1][0].shape[1]
    hid_pad = max(w.shape[1] for w, _ in layers)

    # weights/biases use constant index_maps (VMEM-resident); accounted as
    # double-buffered to stay conservative.
    weight_bytes = 2 * sum(
        w.size * w.dtype.itemsize + b.size * b.dtype.itemsize for w, b in layers
    )
    tb = _pick_batch_tile(batch, in_feat, out_pad, hid_pad, weight_bytes)
    grid = (pl.cdiv(batch, tb),)          # boundary block masked; no batch padding

    args = [x]
    in_specs = [pl.BlockSpec((tb, in_feat), lambda i: (i, 0))]
    for w, b in layers:
        args.extend([w, b])
        in_specs.append(pl.BlockSpec(w.shape, lambda i: (0, 0)))   # VMEM-resident
        in_specs.append(pl.BlockSpec(b.shape, lambda i: (0, 0)))

    flops = 2 * batch * sum(w.shape[0] * w.shape[1] for w, _ in layers)
    bytes_accessed = (
        x.size * x.dtype.itemsize
        + sum(w.size * 2 + b.size * 4 for w, b in layers)
        + batch * out_pad * 4
    )

    kernel = functools.partial(_fused_mlp_kernel, relu_flags=tuple(relu_flags))
    out = pl.pallas_call(
        kernel,
        out_shape=jax.ShapeDtypeStruct((batch, out_pad), jnp.float32),
        grid=grid,
        in_specs=in_specs,
        out_specs=pl.BlockSpec((tb, out_pad), lambda i: (i, 0)),
        compiler_params=pltpu.CompilerParams(
            dimension_semantics=("parallel",),
            vmem_limit_bytes=_VMEM_LIMIT_BYTES,
        ),
        cost_estimate=pl.CostEstimate(
            flops=flops, transcendentals=0, bytes_accessed=bytes_accessed
        ),
    )(*args)

    # Lane-padded logits sliced back; fuses with the surrounding jit.
    return out[:, :out_features]


# ----------------------------------------------------------------------------
# Whole forward (reshape + kernel + slice) as one jitted function.
# ----------------------------------------------------------------------------
@functools.partial(jax.jit, static_argnames=("relu_flags", "out_features"))
def _server_forward(x, params, relu_flags, out_features):
    in_feat = params[0][0].shape[0]
    x = x.reshape(-1, in_feat)            # MLP: identity; CNN: flatten feature maps
    return fused_mlp(x, list(params), relu_flags, out_features)


# ----------------------------------------------------------------------------
# Parameter init (mimics PyTorch nn.Linear default init).
#  * First layer keeps K == in_features (matches raw, un-padded x).
#  * Later layers pad K up to the previous layer's 128-padded output width.
#  * All output widths padded to 128 lanes; weights stored bf16, bias f32.
# ----------------------------------------------------------------------------
def _init_linear(key, in_features, out_features, pad_in):
    kw, kb = jax.random.split(key)
    bound = 1.0 / jnp.sqrt(float(in_features))
    w = jax.random.uniform(kw, (in_features, out_features), jnp.float32, -bound, bound)
    b = jax.random.uniform(kb, (1, out_features), jnp.float32, -bound, bound)

    k_dim = _round_up(in_features, _LANE) if pad_in else in_features
    out_pad = _round_up(out_features, _LANE)
    w_pad = jnp.pad(w, ((0, k_dim - in_features), (0, out_pad - out_features)))
    b_pad = jnp.pad(b, ((0, 0), (0, out_pad - out_features)))
    return w_pad.astype(jnp.bfloat16), b_pad


class ServerSide:
    """JAX/Pallas port of models/Model.py::ServerSide (forward pass, eval mode)."""

    def __init__(self, use_data, use_model, key):
        self.use_data = use_data
        self.use_model = use_model
        self.layers = []      # list of (W bf16, b f32), padded as described above
        self.relu_flags = []
        self.out_features = None

        if use_model == "mlp":
            self.layers = [
                _init_linear(key, mat_size[use_data][1], mat_size[use_data][2], pad_in=False)
            ]
            self.relu_flags = [False]
            self.out_features = mat_size[use_data][2]
        elif use_model == "cnn" and use_data == "mnist":
            k0, k1 = jax.random.split(key)
            self.layers = [
                _init_linear(k0, 320, 50, pad_in=False),
                _init_linear(k1, 50, 10, pad_in=True),
            ]
            self.relu_flags = [True, False]
            self.out_features = 10
            # TODO(synk): F.dropout(x, training=self.training) is eval-mode identity here.
        elif use_model == "cnn" and use_data == "cifar10":
            k0, k1, k2 = jax.random.split(key, 3)
            self.layers = [
                _init_linear(k0, 16 * 5 * 5, 120, pad_in=False),
                _init_linear(k1, 120, 84, pad_in=True),
                _init_linear(k2, 84, 10, pad_in=True),
            ]
            self.relu_flags = [True, True, False]
            self.out_features = 10
        elif use_model == "cnn" and use_data == "cifar100":
            k0, k1, k2 = jax.random.split(key, 3)
            self.layers = [
                _init_linear(k0, 16 * 5 * 5, 120, pad_in=False),
                _init_linear(k1, 120, 84, pad_in=True),
                _init_linear(k2, 84, 100, pad_in=True),
            ]
            self.relu_flags = [True, True, False]
            self.out_features = 100
        elif use_model == "cnn" and use_data == "tiny-imagenet":
            pass  # PyTorch branch is `pass` -> forward returns x unchanged
        else:
            raise Exception(
                f"无法创建ClientSide，未识别use_model：{use_model}和use_data：{use_data}"
            )

    def __call__(self, x):
        if self.use_model == "cnn" and self.use_data == "tiny-imagenet":
            return x
        if not self.layers:
            return x
        x = jnp.asarray(x)
        if not jnp.issubdtype(x.dtype, jnp.floating):
            x = x.astype(jnp.float32)   # avoid double-rounding float inputs
        return _server_forward(
            x, tuple(self.layers), tuple(self.relu_flags), self.out_features
        )


# ----------------------------------------------------------------------------
# Pure-JAX reference replicating the kernel's bf16-operand / f32-accum numerics.
# ----------------------------------------------------------------------------
def _ref_forward(model, x_flat):
    h = x_flat.astype(jnp.bfloat16)
    n = len(model.layers)
    for i, ((w, b), r) in enumerate(zip(model.layers, model.relu_flags)):
        acc = jnp.dot(h, w, preferred_element_type=jnp.float32) + b
        if r:
            acc = jnp.maximum(acc, 0.0)
        h = acc.astype(jnp.bfloat16) if i + 1 < n else acc
    return h[:, : model.out_features]


if __name__ == "__main__":
    key = jax.random.PRNGKey(0)
    k_param_cnn, k_param_mlp, k_x1, k_x2 = jax.random.split(key, 4)

    # --- cnn / cifar10 branch: server side of a split LeNet-style net ---
    model_cnn = ServerSide("cifar10", "cnn", k_param_cnn)
    # client-side output arrives as (B, 16, 5, 5) feature maps (NCHW)
    x_cnn = jax.random.normal(k_x1, (4, 16, 5, 5), jnp.float32)
    y_cnn = jax.block_until_ready(model_cnn(x_cnn))
    assert y_cnn.shape == (4, 10), y_cnn.shape
    ref_cnn = _ref_forward(model_cnn, x_cnn.reshape(-1, 400))
    assert jnp.allclose(y_cnn, ref_cnn, atol=1e-2, rtol=1e-2), (
        float(jnp.max(jnp.abs(y_cnn - ref_cnn)))
    )

    # --- mlp / mnist branch: single hidden->output Linear ---
    model_mlp = ServerSide("mnist", "mlp", k_param_mlp)
    x_mlp = jax.random.normal(k_x2, (4, 200), jnp.float32)  # hidden width 200
    y_mlp = jax.block_until_ready(model_mlp(x_mlp))
    assert y_mlp.shape == (4, 10), y_mlp.shape
    ref_mlp = _ref_forward(model_mlp, x_mlp)
    assert jnp.allclose(y_mlp, ref_mlp, atol=1e-2, rtol=1e-2), (
        float(jnp.max(jnp.abs(y_mlp - ref_mlp)))
    )

    print("KERNEL_OK")
</pallas_src>

<mosaic_0001>
module attributes {stable_mosaic.version = 11 : i64} {
  func.func @_fused_mlp_kernel(%arg0: i32, %arg1: memref<16x400xf32, #tpu.memory_space<vmem>>, %arg2: memref<400x128xbf16, #tpu.memory_space<vmem>>, %arg3: memref<1x128xf32, #tpu.memory_space<vmem>>, %arg4: memref<128x128xbf16, #tpu.memory_space<vmem>>, %arg5: memref<1x128xf32, #tpu.memory_space<vmem>>, %arg6: memref<128x128xbf16, #tpu.memory_space<vmem>>, %arg7: memref<1x128xf32, #tpu.memory_space<vmem>>, %arg8: memref<16x128xf32, #tpu.memory_space<vmem>>) attributes {dimension_semantics = [#tpu.dimension_semantics<parallel>], iteration_bounds = array<i64: 1>, scalar_prefetch = 0 : i64, scratch_operands = 0 : i64, tpu.core_type = #tpu.core_type<tc>, window_params = [{transform_indices = @transform_0, window_bounds = array<i64: 16, 400>}, {pipeline_mode = #tpu.pipeline_mode<synchronous>, transform_indices = @transform_1, window_bounds = array<i64: 400, 128>}, {pipeline_mode = #tpu.pipeline_mode<synchronous>, transform_indices = @transform_2, window_bounds = array<i64: 1, 128>}, {pipeline_mode = #tpu.pipeline_mode<synchronous>, transform_indices = @transform_3, window_bounds = array<i64: 128, 128>}, {pipeline_mode = #tpu.pipeline_mode<synchronous>, transform_indices = @transform_4, window_bounds = array<i64: 1, 128>}, {pipeline_mode = #tpu.pipeline_mode<synchronous>, transform_indices = @transform_5, window_bounds = array<i64: 128, 128>}, {pipeline_mode = #tpu.pipeline_mode<synchronous>, transform_indices = @transform_6, window_bounds = array<i64: 1, 128>}, {transform_indices = @transform_7, window_bounds = array<i64: 16, 128>}]} {
    %c0 = arith.constant 0 : index
    %c0_0 = arith.constant 0 : index
    %0 = vector.load %arg1[%c0, %c0_0] : memref<16x400xf32, #tpu.memory_space<vmem>>, vector<16x400xf32>
    %1 = arith.truncf %0 : vector<16x400xf32> to vector<16x400xbf16>
    %c0_1 = arith.constant 0 : index
    %c0_2 = arith.constant 0 : index
    %2 = vector.load %arg2[%c0_1, %c0_2] : memref<400x128xbf16, #tpu.memory_space<vmem>>, vector<400x128xbf16>
    %c0_3 = arith.constant 0 : index
    %c0_4 = arith.constant 0 : index
    %3 = vector.load %arg3[%c0_3, %c0_4] : memref<1x128xf32, #tpu.memory_space<vmem>>, vector<1x128xf32>
    %cst = arith.constant dense<0.000000e+00> : vector<16x128xf32>
    %4 = tpu.matmul %1, %2, %cst {dimension_numbers = #tpu.dot_dimension_numbers<[1], [0], [0], [1], [0, 0, 1, 1], [], []>} : vector<16x400xbf16>, vector<400x128xbf16>, vector<16x128xf32> -> vector<16x128xf32>
    %5 = vector.broadcast %3 : vector<1x128xf32> to vector<16x128xf32>
    %6 = arith.addf %4, %5 : vector<16x128xf32>
    %cst_5 = arith.constant 0.000000e+00 : f32
    %7 = vector.broadcast %cst_5 : f32 to vector<16x128xf32>
    %8 = arith.maximumf %6, %7 : vector<16x128xf32>
    %9 = arith.truncf %8 : vector<16x128xf32> to vector<16x128xbf16>
    %c0_6 = arith.constant 0 : index
    %c0_7 = arith.constant 0 : index
    %10 = vector.load %arg4[%c0_6, %c0_7] : memref<128x128xbf16, #tpu.memory_space<vmem>>, vector<128x128xbf16>
    %c0_8 = arith.constant 0 : index
    %c0_9 = arith.constant 0 : index
    %11 = vector.load %arg5[%c0_8, %c0_9] : memref<1x128xf32, #tpu.memory_space<vmem>>, vector<1x128xf32>
    %cst_10 = arith.constant dense<0.000000e+00> : vector<16x128xf32>
    %12 = tpu.matmul %9, %10, %cst_10 {dimension_numbers = #tpu.dot_dimension_numbers<[1], [0], [0], [1], [0, 0, 1, 1], [], []>} : vector<16x128xbf16>, vector<128x128xbf16>, vector<16x128xf32> -> vector<16x128xf32>
    %13 = vector.broadcast %11 : vector<1x128xf32> to vector<16x128xf32>
    %14 = arith.addf %12, %13 : vector<16x128xf32>
    %cst_11 = arith.constant 0.000000e+00 : f32
    %15 = vector.broadcast %cst_11 : f32 to vector<16x128xf32>
    %16 = arith.maximumf %14, %15 : vector<16x128xf32>
    %17 = arith.truncf %16 : vector<16x128xf32> to vector<16x128xbf16>
    %c0_12 = arith.constant 0 : index
    %c0_13 = arith.constant 0 : index
    %18 = vector.load %arg6[%c0_12, %c0_13] : memref<128x128xbf16, #tpu.memory_space<vmem>>, vector<128x128xbf16>
    %c0_14 = arith.constant 0 : index
    %c0_15 = arith.constant 0 : index
    %19 = vector.load %arg7[%c0_14, %c0_15] : memref<1x128xf32, #tpu.memory_space<vmem>>, vector<1x128xf32>
    %cst_16 = arith.constant dense<0.000000e+00> : vector<16x128xf32>
    %20 = tpu.matmul %17, %18, %cst_16 {dimension_numbers = #tpu.dot_dimension_numbers<[1], [0], [0], [1], [0, 0, 1, 1], [], []>} : vector<16x128xbf16>, vector<128x128xbf16>, vector<16x128xf32> -> vector<16x128xf32>
    %21 = vector.broadcast %19 : vector<1x128xf32> to vector<16x128xf32>
    %22 = arith.addf %20, %21 : vector<16x128xf32>
    %c0_17 = arith.constant 0 : index
    %c0_18 = arith.constant 0 : index
    %23 = vector.load %arg8[%c0_17, %c0_18] : memref<16x128xf32, #tpu.memory_space<vmem>>, vector<16x128xf32>
    tpu.vector_store %arg8[%c0_17, %c0_18], %22 {strides = array<i32>} : memref<16x128xf32, #tpu.memory_space<vmem>>, vector<16x128xf32>,
    return
  }
  func.func @transform_0(%arg0: i32) -> (i32, i32) {
    %c0_i32 = arith.constant 0 : i32
    %c0_i32_0 = arith.constant 0 : i32
    return %arg0, %c0_i32 : i32, i32
  }
  func.func @transform_1(%arg0: i32) -> (i32, i32) {
    %c0_i32 = arith.constant 0 : i32
    %c0_i32_0 = arith.constant 0 : i32
    %c0_i32_1 = arith.constant 0 : i32
    return %c0_i32, %c0_i32_0 : i32, i32
  }
  func.func @transform_2(%arg0: i32) -> (i32, i32) {
    %c0_i32 = arith.constant 0 : i32
    %c0_i32_0 = arith.constant 0 : i32
    %c0_i32_1 = arith.constant 0 : i32
    return %c0_i32, %c0_i32_0 : i32, i32
  }
  func.func @transform_3(%arg0: i32) -> (i32, i32) {
    %c0_i32 = arith.constant 0 : i32
    %c0_i32_0 = arith.constant 0 : i32
    %c0_i32_1 = arith.constant 0 : i32
    return %c0_i32, %c0_i32_0 : i32, i32
  }
  func.func @transform_4(%arg0: i32) -> (i32, i32) {
    %c0_i32 = arith.constant 0 : i32
    %c0_i32_0 = arith.constant 0 : i32
    %c0_i32_1 = arith.constant 0 : i32
    return %c0_i32, %c0_i32_0 : i32, i32
  }
  func.func @transform_5(%arg0: i32) -> (i32, i32) {
    %c0_i32 = arith.constant 0 : i32
    %c0_i32_0 = arith.constant 0 : i32
    %c0_i32_1 = arith.constant 0 : i32
    return %c0_i32, %c0_i32_0 : i32, i32
  }
  func.func @transform_6(%arg0: i32) -> (i32, i32) {
    %c0_i32 = arith.constant 0 : i32
    %c0_i32_0 = arith.constant 0 : i32
    %c0_i32_1 = arith.constant 0 : i32
    return %c0_i32, %c0_i32_0 : i32, i32
  }
  func.func @transform_7(%arg0: i32) -> (i32, i32) {
    %c0_i32 = arith.constant 0 : i32
    %c0_i32_0 = arith.constant 0 : i32
    return %arg0, %c0_i32 : i32, i32
  }
}

</mosaic_0001>

<llo_original>
// kernel: _server_forward.1
$region0: #{_server_forward.1}
  #allocation0 [shape = 'u32[]', space=smem, size = 0x4, offset = 0x4, fixed_abs, tag = 'smem constant byte address 0x4 - core index']
  #allocation1 [shape = 'u32[144,128]{1,0:T(1,128)}', space=vmem, size = 0x12000, scoped, tag = 'internal scratch']
  %s0 = inlined_call_operand.vmem [shape: f32[4,400], index: 0, kind: input, shape index: {}]
  %s1 = inlined_call_operand.vmem [shape: bf16[400,128], index: 1, kind: input, shape index: {}]
  %s2 = inlined_call_operand.vmem [shape: f32[1,128], index: 2, kind: input, shape index: {}]
  %s3 = inlined_call_operand.vmem [shape: bf16[128,128], index: 3, kind: input, shape index: {}]
  %s4 = inlined_call_operand.vmem [shape: f32[1,128], index: 4, kind: input, shape index: {}]
  %s5 = inlined_call_operand.vmem [shape: bf16[128,128], index: 5, kind: input, shape index: {}]
  %s6 = inlined_call_operand.vmem [shape: f32[1,128], index: 6, kind: input, shape index: {}]
  %s7 = inlined_call_operand.hbm [shape: f32[4,128], index: 7, kind: output, shape index: {}]
  %s8 = sld [smem:[#allocation0]]
  $region38: #{_server_forward.1} parent=0
    _
  %s10 = ssub.s32 1, %s8
  %s11 = scalar_select 0, %s10, %s8
  $region1: #{_server_forward.1} parent=0
    #allocation2 [shape = 'u8[8192]{0}', space=vmem, size = 0x2000, scoped, tag = 'output window, operand 0, single buffered']
    #allocation3 [shape = 's32[1]{0}', space=sflag, size = 0x4, scoped, tag = 'scoped memory for _server_forward.1']
    %12 = vsyncpa [#allocation3], 0
    // Predicated region
    $region2: #{_server_forward.1} parent=1 // pred_check
      _
    $region3: #{_server_forward.1} parent=1 // pred_check_branch
      %14 = sbr.rel (0) target = $region5
    $region4: #{_server_forward.1} parent=1 // pred_region
      _
    $region5: #{_server_forward.1} parent=1 // pred_fallthru
      _
    // Predicated region
    $region6: #{_server_forward.1} parent=1 // pred_check
      _
    $region7: #{_server_forward.1} parent=1 // pred_check_branch
      %16 = sbr.rel (0) target = $region9
    $region8: #{_server_forward.1} parent=1 // pred_region
      _
    $region9: #{_server_forward.1} parent=1 // pred_fallthru
      _
    // Predicated region
    $region10: #{_server_forward.1} parent=1 // pred_check
      _
    $region11: #{_server_forward.1} parent=1 // pred_check_branch
      %18 = sbr.rel (0) target = $region13
    $region12: #{_server_forward.1} parent=1 // pred_region
      _
    $region13: #{_server_forward.1} parent=1 // pred_fallthru
      _
    // Predicated region
    $region14: #{_server_forward.1} parent=1 // pred_check
      _
    $region15: #{_server_forward.1} parent=1 // pred_check_branch
      %20 = sbr.rel (0) target = $region17
    $region16: #{_server_forward.1} parent=1 // pred_region
      _
    $region17: #{_server_forward.1} parent=1 // pred_fallthru
      _
    // Predicated region
    $region18: #{_server_forward.1} parent=1 // pred_check
      _
    $region19: #{_server_forward.1} parent=1 // pred_check_branch
      %22 = sbr.rel (0) target = $region21
    $region20: #{_server_forward.1} parent=1 // pred_region
      _
    $region21: #{_server_forward.1} parent=1 // pred_fallthru
      _
    // Predicated region
    $region22: #{_server_forward.1} parent=1 // pred_check
      _
    $region23: #{_server_forward.1} parent=1 // pred_check_branch
      %24 = sbr.rel (0) target = $region25
    $region24: #{_server_forward.1} parent=1 // pred_region
      _
    $region25: #{_server_forward.1} parent=1 // pred_fallthru
      _
    // Predicated region
    $region26: #{_server_forward.1} parent=1 // pred_check
      _
    $region27: #{_server_forward.1} parent=1 // pred_check_branch
      %26 = sbr.rel (0) target = $region29
    $region28: #{_server_forward.1} parent=1 // pred_region
      _
    $region29: #{_server_forward.1} parent=1 // pred_fallthru
      _
    %v28 = vld [vmem:[%s0] sm:$0xff]
    %v29 = vld [vmem:[%s0 + $0x8] sm:$0xff]
    %v30 = vld [vmem:[%s0 + $0x10] sm:$0xff]
    %v31 = vld [vmem:[%s0 + $0x18] sm:$0xff]
    %v32 = vld [vmem:[%s0 + $0x20] sm:$0xff]
    %v33 = vld [vmem:[%s0 + $0x28] sm:$0xff]
    %v34 = vld [vmem:[%s0 + $0x30] sm:$0xff]
    %v35 = vld [vmem:[%s0 + $0x38] sm:$0xff]
    %v44 = vcombine.low %v28, %v30
    %v45 = vcombine.high %v28, %v30
    %v46 = vcombine.low %v29, %v31
    %v47 = vcombine.high %v29, %v31
    %v48 = vcombine.low %v32, %v34
    %v49 = vcombine.high %v32, %v34
    %v50 = vcombine.low %v33, %v35
    %v51 = vcombine.high %v33, %v35
    %v60 = vpack.c.bf16 %v48, %v44
    %v61 = vpack.c.bf16 %v49, %v45
    %v62 = vpack.c.bf16 %v50, %v46
    %v63 = vpack.c.bf16 %v51, %v47
    %v64 = vld [vmem:[%s1] sm:$0xf]
    %v65 = vld [vmem:[%s1 + $0x4] sm:$0xf]
    %v66 = vld [vmem:[%s1 + $0x8] sm:$0xf]
    %v67 = vld [vmem:[%s1 + $0xc] sm:$0xf]
    %v68 = vld [vmem:[%s1 + $0x10] sm:$0xf]
    %v69 = vld [vmem:[%s1 + $0x14] sm:$0xf]
    %v70 = vld [vmem:[%s1 + $0x18] sm:$0xf]
    %v71 = vld [vmem:[%s1 + $0x1c] sm:$0xf]
    %v72 = vld [vmem:[%s1 + $0x20] sm:$0xf]
    %v73 = vld [vmem:[%s1 + $0x24] sm:$0xf]
    %v74 = vld [vmem:[%s1 + $0x28] sm:$0xf]
    %v75 = vld [vmem:[%s1 + $0x2c] sm:$0xf]
    %v76 = vld [vmem:[%s1 + $0x30] sm:$0xf]
    %v77 = vld [vmem:[%s1 + $0x34] sm:$0xf]
    %v78 = vld [vmem:[%s1 + $0x38] sm:$0xf]
    %v79 = vld [vmem:[%s1 + $0x3c] sm:$0xf]
    %v80 = vld [vmem:[%s1 + $0x40] sm:$0xf]
    %v81 = vld [vmem:[%s1 + $0x44] sm:$0xf]
    %v82 = vld [vmem:[%s1 + $0x48] sm:$0xf]
    %v83 = vld [vmem:[%s1 + $0x4c] sm:$0xf]
    %v84 = vld [vmem:[%s1 + $0x50] sm:$0xf]
    %v85 = vld [vmem:[%s1 + $0x54] sm:$0xf]
    %v86 = vld [vmem:[%s1 + $0x58] sm:$0xf]
    %v87 = vld [vmem:[%s1 + $0x5c] sm:$0xf]
    %v88 = vld [vmem:[%s1 + $0x60] sm:$0xf]
    %v89 = vld [vmem:[%s1 + $0x64] sm:$0xf]
    %v90 = vld [vmem:[%s1 + $0x68] sm:$0xf]
    %v91 = vld [vmem:[%s1 + $0x6c] sm:$0xf]
    %v92 = vld [vmem:[%s1 + $0x70] sm:$0xf]
    %v93 = vld [vmem:[%s1 + $0x74] sm:$0xf]
    %v94 = vld [vmem:[%s1 + $0x78] sm:$0xf]
    %v95 = vld [vmem:[%s1 + $0x7c] sm:$0xf]
    %v96 = vld [vmem:[%s1 + $0x80] sm:$0xf]
    %v97 = vld [vmem:[%s1 + $0x84] sm:$0xf]
    %v98 = vld [vmem:[%s1 + $0x88] sm:$0xf]
    %v99 = vld [vmem:[%s1 + $0x8c] sm:$0xf]
    %v100 = vld [vmem:[%s1 + $0x90] sm:$0xf]
    %v101 = vld [vmem:[%s1 + $0x94] sm:$0xf]
    %v102 = vld [vmem:[%s1 + $0x98] sm:$0xf]
    %v103 = vld [vmem:[%s1 + $0x9c] sm:$0xf]
    %v104 = vld [vmem:[%s1 + $0xa0] sm:$0xf]
    %v105 = vld [vmem:[%s1 + $0xa4] sm:$0xf]
    %v106 = vld [vmem:[%s1 + $0xa8] sm:$0xf]
    %v107 = vld [vmem:[%s1 + $0xac] sm:$0xf]
    %v108 = vld [vmem:[%s1 + $0xb0] sm:$0xf]
    %v109 = vld [vmem:[%s1 + $0xb4] sm:$0xf]
    %v110 = vld [vmem:[%s1 + $0xb8] sm:$0xf]
    %v111 = vld [vmem:[%s1 + $0xbc] sm:$0xf]
    %v112 = vld [vmem:[%s1 + $0xc0] sm:$0xf]
    %v113 = vld [vmem:[%s1 + $0xc4] sm:$0xf]
    %v114 = vld [vmem:[%s2] sm:$0x1]
    %v116 = vlaneseq
    %v117 = vshrl.u32 %v116, 7
    %v118 = vsub.s32 0, %v117
    %v119 = vrot.slane %v114, %v118
    %v171 = vunpack.c.l.b16 %v64
    %v172 = vunpack.c.l.b16 %v65
    %v173 = vunpack.c.l.b16 %v66
    %v174 = vunpack.c.l.b16 %v67
    %v175 = vunpack.c.l.b16 %v68
    %v176 = vunpack.c.l.b16 %v69
    %v177 = vunpack.c.l.b16 %v70
    %v178 = vunpack.c.l.b16 %v71
    %v179 = vunpack.c.l.b16 %v72
    %v180 = vunpack.c.l.b16 %v73
    %v181 = vunpack.c.l.b16 %v74
    %v182 = vunpack.c.l.b16 %v75
    %v183 = vunpack.c.l.b16 %v76
    %v184 = vunpack.c.l.b16 %v77
    %v185 = vunpack.c.l.b16 %v78
    %v186 = vunpack.c.l.b16 %v79
    %v187 = vunpack.c.l.b16 %v80
    %v188 = vunpack.c.l.b16 %v81
    %v189 = vunpack.c.l.b16 %v82
    %v190 = vunpack.c.l.b16 %v83
    %v191 = vunpack.c.l.b16 %v84
    %v192 = vunpack.c.l.b16 %v85
    %v193 = vunpack.c.l.b16 %v86
    %v194 = vunpack.c.l.b16 %v87
    %v195 = vunpack.c.l.b16 %v88
    %v196 = vunpack.c.l.b16 %v89
    %v197 = vunpack.c.l.b16 %v90
    %v198 = vunpack.c.l.b16 %v91
    %v199 = vunpack.c.l.b16 %v92
    %v200 = vunpack.c.l.b16 %v93
    %v201 = vunpack.c.l.b16 %v94
    %v202 = vunpack.c.l.b16 %v95
    %v203 = vunpack.c.l.b16 %v96
    %v204 = vunpack.c.l.b16 %v97
    %v205 = vunpack.c.l.b16 %v98
    %v206 = vunpack.c.l.b16 %v99
    %v207 = vunpack.c.l.b16 %v100
    %v208 = vunpack.c.l.b16 %v101
    %v209 = vunpack.c.l.b16 %v102
    %v210 = vunpack.c.l.b16 %v103
    %v211 = vunpack.c.l.b16 %v104
    %v212 = vunpack.c.l.b16 %v105
    %v213 = vunpack.c.l.b16 %v106
    %v214 = vunpack.c.l.b16 %v107
    %v215 = vunpack.c.l.b16 %v108
    %v216 = vunpack.c.l.b16 %v109
    %v217 = vunpack.c.l.b16 %v110
    %v218 = vunpack.c.l.b16 %v111
    %v219 = vunpack.c.l.b16 %v112
    %v220 = vunpack.c.l.b16 %v113
    %v221 = vpack.c.b16 %v172, %v171
    %v222 = vpack.c.b16 %v174, %v173
    %v223 = vpack.c.b16 %v176, %v175
    %v224 = vpack.c.b16 %v178, %v177
    %v225 = vpack.c.b16 %v180, %v179
    %v226 = vpack.c.b16 %v182, %v181
    %v227 = vpack.c.b16 %v184, %v183
    %v228 = vpack.c.b16 %v186, %v185
    %v229 = vpack.c.b16 %v188, %v187
    %v230 = vpack.c.b16 %v190, %v189
    %v231 = vpack.c.b16 %v192, %v191
    %v232 = vpack.c.b16 %v194, %v193
    %v233 = vpack.c.b16 %v196, %v195
    %v234 = vpack.c.b16 %v198, %v197
    %v235 = vpack.c.b16 %v200, %v199
    %v236 = vpack.c.b16 %v202, %v201
    %v237 = vpack.c.b16 %v204, %v203
    %v238 = vpack.c.b16 %v206, %v205
    %v239 = vpack.c.b16 %v208, %v207
    %v240 = vpack.c.b16 %v210, %v209
    %v241 = vpack.c.b16 %v212, %v211
    %v242 = vpack.c.b16 %v214, %v213
    %v243 = vpack.c.b16 %v216, %v215
    %v244 = vpack.c.b16 %v218, %v217
    %v245 = vpack.c.b16 %v220, %v219
    %vm271 = vcmask 130048
    %v273 = vsel %vm271, %v63, 0
    %275 = vmatprep.subr.bf16.mxu0 0
    %276 = vmatpush1.bf16.msra.mxu0 %v228
    %277 = vmatprep.subr.bf16.mxu0 0
    %278 = vmatpush1.bf16.msra.mxu0 %v227
    %279 = vmatprep.subr.bf16.mxu0 0
    %280 = vmatpush1.bf16.msra.mxu0 %v226
    %281 = vmatprep.subr.bf16.mxu0 0
    %282 = vmatpush1.bf16.msra.mxu0 %v225
    %283 = vmatprep.subr.bf16.mxu0 0
    %284 = vmatpush1.bf16.msra.mxu0 %v224
    %285 = vmatprep.subr.bf16.mxu0 0
    %286 = vmatpush1.bf16.msra.mxu0 %v223
    %287 = vmatprep.subr.bf16.mxu0 0
    %288 = vmatpush1.bf16.msra.mxu0 %v222
    %289 = vmatprep.subr.bf16.mxu0 0
    %290 = vmatpush1.bf16.msra.mxu0 %v221
    %291 = vmatprep.subr.bf16.mxu0 0
    %292 = vmatpush2.bf16.msra.mxu0 %v236
    %293 = vmatprep.subr.bf16.mxu0 0
    %294 = vmatpush2.bf16.msra.mxu0 %v235
    %295 = vmatprep.subr.bf16.mxu0 0
    %296 = vmatpush2.bf16.msra.mxu0 %v234
    %297 = vmatprep.subr.bf16.mxu0 0
    %298 = vmatpush2.bf16.msra.mxu0 %v233
    %299 = vmatprep.subr.bf16.mxu0 0
    %300 = vmatpush2.bf16.msra.mxu0 %v232
    %301 = vmatprep.subr.bf16.mxu0 0
    %302 = vmatpush2.bf16.msra.mxu0 %v231
    %303 = vmatprep.subr.bf16.mxu0 0
    %304 = vmatpush2.bf16.msra.mxu0 %v230
    %305 = vmatprep.subr.bf16.mxu0 0
    %306 = vmatpush2.bf16.msra.mxu0 %v229
    %307 = vmatprep.mubr.bf16.mxu0 %v61
    %308 = vmatmul.mubr.bf16.gmra.mxu0 %v60
    %v309 = vpop.f32.mrf.mxu0
    %v310 = vadd.f32 %v119, %v309
    %v311 = vpop.f32.mrf.mxu0
    %v312 = vpop.f32.mrf.mxu0
    %v313 = vadd.f32 %v119, %v312
    %v314 = vpop.f32.mrf.mxu0
    %315 = vdwg.mxu0
    %316 = vmatprep.subr.bf16.mxu0 0
    %317 = vmatpush1.bf16.msra.mxu0 %v244
    %318 = vmatprep.subr.bf16.mxu0 0
    %319 = vmatpush1.bf16.msra.mxu0 %v243
    %320 = vmatprep.subr.bf16.mxu0 0
    %321 = vmatpush1.bf16.msra.mxu0 %v242
    %322 = vmatprep.subr.bf16.mxu0 0
    %323 = vmatpush1.bf16.msra.mxu0 %v241
    %324 = vmatprep.subr.bf16.mxu0 0
    %325 = vmatpush1.bf16.msra.mxu0 %v240
    %326 = vmatprep.subr.bf16.mxu0 0
    %327 = vmatpush1.bf16.msra.mxu0 %v239
    %328 = vmatprep.subr.bf16.mxu0 0
    %329 = vmatpush1.bf16.msra.mxu0 %v238
    %330 = vmatprep.subr.bf16.mxu0 0
    %331 = vmatpush1.bf16.msra.mxu0 %v237
    %332 = vmatprep.subr.bf16.mxu0 0
    %333 = vmatpush2.bf16.msra.mxu0 0
    %334 = vmatprep.subr.bf16.mxu0 0
    %335 = vmatpush2.bf16.msra.mxu0 0
    %336 = vmatprep.subr.bf16.mxu0 0
    %337 = vmatpush2.bf16.msra.mxu0 0
    %338 = vmatprep.subr.bf16.mxu0 0
    %339 = vmatpush2.bf16.msra.mxu0 0
    %340 = vmatprep.subr.bf16.mxu0 0
    %341 = vmatpush2.bf16.msra.mxu0 0
    %342 = vmatprep.subr.bf16.mxu0 0
    %343 = vmatpush2.bf16.msra.mxu0 0
    %344 = vmatprep.subr.bf16.mxu0 0
    %345 = vmatpush2.bf16.msra.mxu0 0
    %346 = vmatprep.subr.bf16.mxu0 0
    %347 = vmatpush2.bf16.msra.mxu0 %v245
    %348 = vmatprep.mubr.bf16.mxu0 %v273
    %349 = vmatmul.mubr.bf16.gmra.mxu0 %v62
    %v350 = vpop.f32.mrf.mxu0
    %v351 = vadd.f32 %v310, %v350
    %v352 = vpop.f32.mrf.mxu0
    %v353 = vpop.f32.mrf.mxu0
    %v354 = vadd.f32 %v313, %v353
    %v355 = vpop.f32.mrf.mxu0
    %356 = vdwg.mxu0
    %v357 = vmax.f32 %v351, 0.0
    %v358 = vmax.f32 %v354, 0.0
    %v359 = vpack.c.bf16 %v358, %v357
    %v360 = vld [vmem:[%s3] sm:$0xf]
    %v361 = vld [vmem:[%s3 + $0x4] sm:$0xf]
    %v362 = vld [vmem:[%s3 + $0x8] sm:$0xf]
    %v363 = vld [vmem:[%s3 + $0xc] sm:$0xf]
    %v364 = vld [vmem:[%s3 + $0x10] sm:$0xf]
    %v365 = vld [vmem:[%s3 + $0x14] sm:$0xf]
    %v366 = vld [vmem:[%s3 + $0x18] sm:$0xf]
    %v367 = vld [vmem:[%s3 + $0x1c] sm:$0xf]
    %v368 = vld [vmem:[%s3 + $0x20] sm:$0xf]
    %v369 = vld [vmem:[%s3 + $0x24] sm:$0xf]
    %v370 = vld [vmem:[%s3 + $0x28] sm:$0xf]
    %v371 = vld [vmem:[%s3 + $0x2c] sm:$0xf]
    %v372 = vld [vmem:[%s3 + $0x30] sm:$0xf]
    %v373 = vld [vmem:[%s3 + $0x34] sm:$0xf]
    %v374 = vld [vmem:[%s3 + $0x38] sm:$0xf]
    %v375 = vld [vmem:[%s3 + $0x3c] sm:$0xf]
    %v376 = vld [vmem:[%s4] sm:$0x1]
    %v378 = vlaneseq
    %v379 = vshrl.u32 %v378, 7
    %v380 = vsub.s32 0, %v379
    %v381 = vrot.slane %v376, %v380
    %v399 = vunpack.c.l.b16 %v360
    %v400 = vunpack.c.l.b16 %v361
    %v401 = vunpack.c.l.b16 %v362
    %v402 = vunpack.c.l.b16 %v363
    %v403 = vunpack.c.l.b16 %v364
    %v404 = vunpack.c.l.b16 %v365
    %v405 = vunpack.c.l.b16 %v366
    %v406 = vunpack.c.l.b16 %v367
    %v407 = vunpack.c.l.b16 %v368
    %v408 = vunpack.c.l.b16 %v369
    %v409 = vunpack.c.l.b16 %v370
    %v410 = vunpack.c.l.b16 %v371
    %v411 = vunpack.c.l.b16 %v372
    %v412 = vunpack.c.l.b16 %v373
    %v413 = vunpack.c.l.b16 %v374
    %v414 = vunpack.c.l.b16 %v375
    %v415 = vpack.c.b16 %v400, %v399
    %v416 = vpack.c.b16 %v402, %v401
    %v417 = vpack.c.b16 %v404, %v403
    %v418 = vpack.c.b16 %v406, %v405
    %v419 = vpack.c.b16 %v408, %v407
    %v420 = vpack.c.b16 %v410, %v409
    %v421 = vpack.c.b16 %v412, %v411
    %v422 = vpack.c.b16 %v414, %v413
    %431 = vmatprep.subr.bf16.mxu0 0
    %432 = vmatpush1.bf16.msra.mxu0 %v422
    %433 = vmatprep.subr.bf16.mxu0 0
    %434 = vmatpush1.bf16.msra.mxu0 %v421
    %435 = vmatprep.subr.bf16.mxu0 0
    %436 = vmatpush1.bf16.msra.mxu0 %v420
    %437 = vmatprep.subr.bf16.mxu0 0
    %438 = vmatpush1.bf16.msra.mxu0 %v419
    %439 = vmatprep.subr.bf16.mxu0 0
    %440 = vmatpush1.bf16.msra.mxu0 %v418
    %441 = vmatprep.subr.bf16.mxu0 0
    %442 = vmatpush1.bf16.msra.mxu0 %v417
    %443 = vmatprep.subr.bf16.mxu0 0
    %444 = vmatpush1.bf16.msra.mxu0 %v416
    %445 = vmatprep.subr.bf16.mxu0 0
    %446 = vmatpush1.bf16.msra.mxu0 %v415
    %447 = vmatprep.subr.bf16.mxu0 0
    %448 = vmatpush2.bf16.msra.mxu0 0
    %449 = vmatprep.subr.bf16.mxu0 0
    %450 = vmatpush2.bf16.msra.mxu0 0
    %451 = vmatprep.subr.bf16.mxu0 0
    %452 = vmatpush2.bf16.msra.mxu0 0
    %453 = vmatprep.subr.bf16.mxu0 0
    %454 = vmatpush2.bf16.msra.mxu0 0
    %455 = vmatprep.subr.bf16.mxu0 0
    %456 = vmatpush2.bf16.msra.mxu0 0
    %457 = vmatprep.subr.bf16.mxu0 0
    %458 = vmatpush2.bf16.msra.mxu0 0
    %459 = vmatprep.subr.bf16.mxu0 0
    %460 = vmatpush2.bf16.msra.mxu0 0
    %461 = vmatprep.subr.bf16.mxu0 0
    %462 = vmatpush2.bf16.msra.mxu0 0
    %463 = vmatprep.mubr.bf16.mxu0 0
    %464 = vmatmul.mubr.bf16.gmra.mxu0 %v359
    %v465 = vpop.f32.mrf.mxu0
    %v466 = vadd.f32 %v381, %v465
    %v467 = vpop.f32.mrf.mxu0
    %v468 = vpop.f32.mrf.mxu0
    %v469 = vadd.f32 %v381, %v468
    %v470 = vpop.f32.mrf.mxu0
    %471 = vdwg.mxu0
    %v472 = vmax.f32 %v466, 0.0
    %v473 = vmax.f32 %v469, 0.0
    %v474 = vpack.c.bf16 %v473, %v472
    %v475 = vld [vmem:[%s5] sm:$0xf]
    %v476 = vld [vmem:[%s5 + $0x4] sm:$0xf]
    %v477 = vld [vmem:[%s5 + $0x8] sm:$0xf]
    %v478 = vld [vmem:[%s5 + $0xc] sm:$0xf]
    %v479 = vld [vmem:[%s5 + $0x10] sm:$0xf]
    %v480 = vld [vmem:[%s5 + $0x14] sm:$0xf]
    %v481 = vld [vmem:[%s5 + $0x18] sm:$0xf]
    %v482 = vld [vmem:[%s5 + $0x1c] sm:$0xf]
    %v483 = vld [vmem:[%s5 + $0x20] sm:$0xf]
    %v484 = vld [vmem:[%s5 + $0x24] sm:$0xf]
    %v485 = vld [vmem:[%s5 + $0x28] sm:$0xf]
    %v486 = vld [vmem:[%s5 + $0x2c] sm:$0xf]
    %v487 = vld [vmem:[%s5 + $0x30] sm:$0xf]
    %v488 = vld [vmem:[%s5 + $0x34] sm:$0xf]
    %v489 = vld [vmem:[%s5 + $0x38] sm:$0xf]
    %v490 = vld [vmem:[%s5 + $0x3c] sm:$0xf]
    %v491 = vld [vmem:[%s6] sm:$0x1]
    %v493 = vlaneseq
    %v494 = vshrl.u32 %v493, 7
    %v495 = vsub.s32 0, %v494
    %v496 = vrot.slane %v491, %v495
    %v514 = vunpack.c.l.b16 %v475
    %v515 = vunpack.c.l.b16 %v476
    %v516 = vunpack.c.l.b16 %v477
    %v517 = vunpack.c.l.b16 %v478
    %v518 = vunpack.c.l.b16 %v479
    %v519 = vunpack.c.l.b16 %v480
    %v520 = vunpack.c.l.b16 %v481
    %v521 = vunpack.c.l.b16 %v482
    %v522 = vunpack.c.l.b16 %v483
    %v523 = vunpack.c.l.b16 %v484
    %v524 = vunpack.c.l.b16 %v485
    %v525 = vunpack.c.l.b16 %v486
    %v526 = vunpack.c.l.b16 %v487
    %v527 = vunpack.c.l.b16 %v488
    %v528 = vunpack.c.l.b16 %v489
    %v529 = vunpack.c.l.b16 %v490
    %v530 = vpack.c.b16 %v515, %v514
    %v531 = vpack.c.b16 %v517, %v516
    %v532 = vpack.c.b16 %v519, %v518
    %v533 = vpack.c.b16 %v521, %v520
    %v534 = vpack.c.b16 %v523, %v522
    %v535 = vpack.c.b16 %v525, %v524
    %v536 = vpack.c.b16 %v527, %v526
    %v537 = vpack.c.b16 %v529, %v528
    %546 = vmatprep.subr.bf16.mxu0 0
    %547 = vmatpush1.bf16.msra.mxu0 %v537
    %548 = vmatprep.subr.bf16.mxu0 0
    %549 = vmatpush1.bf16.msra.mxu0 %v536
    %550 = vmatprep.subr.bf16.mxu0 0
    %551 = vmatpush1.bf16.msra.mxu0 %v535
    %552 = vmatprep.subr.bf16.mxu0 0
    %553 = vmatpush1.bf16.msra.mxu0 %v534
    %554 = vmatprep.subr.bf16.mxu0 0
    %555 = vmatpush1.bf16.msra.mxu0 %v533
    %556 = vmatprep.subr.bf16.mxu0 0
    %557 = vmatpush1.bf16.msra.mxu0 %v532
    %558 = vmatprep.subr.bf16.mxu0 0
    %559 = vmatpush1.bf16.msra.mxu0 %v531
    %560 = vmatprep.subr.bf16.mxu0 0
    %561 = vmatpush1.bf16.msra.mxu0 %v530
    %562 = vmatprep.subr.bf16.mxu0 0
    %563 = vmatpush2.bf16.msra.mxu0 0
    %564 = vmatprep.subr.bf16.mxu0 0
    %565 = vmatpush2.bf16.msra.mxu0 0
    %566 = vmatprep.subr.bf16.mxu0 0
    %567 = vmatpush2.bf16.msra.mxu0 0
    %568 = vmatprep.subr.bf16.mxu0 0
    %569 = vmatpush2.bf16.msra.mxu0 0
    %570 = vmatprep.subr.bf16.mxu0 0
    %571 = vmatpush2.bf16.msra.mxu0 0
    %572 = vmatprep.subr.bf16.mxu0 0
    %573 = vmatpush2.bf16.msra.mxu0 0
    %574 = vmatprep.subr.bf16.mxu0 0
    %575 = vmatpush2.bf16.msra.mxu0 0
    %576 = vmatprep.subr.bf16.mxu0 0
    %577 = vmatpush2.bf16.msra.mxu0 0
    %578 = vmatprep.mubr.bf16.mxu0 0
    %579 = vmatmul.mubr.bf16.gmra.mxu0 %v474
    %v580 = vpop.f32.mrf.mxu0
    %v581 = vadd.f32 %v496, %v580
    %v582 = vpop.f32.mrf.mxu0
    %v583 = vpop.f32.mrf.mxu0
    %v584 = vadd.f32 %v496, %v583
    %v585 = vpop.f32.mrf.mxu0
    %586 = vdwg.mxu0
    %587 = vst [vmem:[#allocation2] sm:$0xff] %v581
    %588 = vst [vmem:[#allocation2 + $0x8] sm:$0xff] %v584
    // Predicated region
    $region30: #{_server_forward.1} parent=1 // pred_check
      _
    $region31: #{_server_forward.1} parent=1 // pred_check_branch
      %590 = sbr.rel (0) target = $region33
    $region32: #{_server_forward.1} parent=1 // pred_region
      %s592 = ssub.s32 256, 64
      %593 = vsyncadd [#allocation3], %s592
      %s594 = sshll.u32 [#allocation2], 4
      %s595 = int_to_ptr.vmem [resolvable:$true] %s594
      %600 = dma.vmem_to_hbm [thread:$0]  %s595, 64, %s7, [#allocation3], 64, 64, 4
    $region33: #{_server_forward.1} parent=1 // pred_fallthru
      _
    // Predicated region
    $region34: #{_server_forward.1} parent=1 // pred_check
      _
    $region35: #{_server_forward.1} parent=1 // pred_check_branch
      %602 = sbr.rel (0) target = $region37
    $region36: #{_server_forward.1} parent=1 // pred_region
      %603 = dma.done [#allocation3], 256
    $region37: #{_server_forward.1} parent=1 // pred_fallthru
      _
    %604 = vsyncpa [#allocation3], 1

</llo_original>
